<compile_context>
chip_gen: v6e
topology: v6e:2x2x1
jax: 0.10.0
libtpu: 0.0.40
codegen_flags: <defaults>
</compile_context>

<pallas_src>
import jax
import jax.numpy as jnp
from jax.experimental import pallas as pl
from jax.experimental.pallas import tpu as pltpu


def fusion_attention_kernel(
    b_diff_ref,        # SMEM (1, 1)   : b_attn[1] - b_attn[0]
    img_ref,           # VMEM (TB, Di)
    feat_ref,          # VMEM (TB, Df)
    w_img_ref,         # VMEM (Di, Fd)
    b_img_ref,         # VMEM (1, Fd)
    w_feat_ref,        # VMEM (Df, Fd)
    b_feat_ref,        # VMEM (1, Fd)
    wa_img_diff_ref,   # VMEM (1, Fd)  : w_attn[:Fd, 1] - w_attn[:Fd, 0]
    wa_feat_diff_ref,  # VMEM (1, Fd)  : w_attn[Fd:, 1] - w_attn[Fd:, 0]
    out_ref,           # VMEM (TB, Fd)
):
    # Projections on the MXU (f32 accumulation), tanh on the EUP in f32.
    proj_img = jnp.tanh(
        jnp.dot(img_ref[...], w_img_ref[...], preferred_element_type=jnp.float32)
        + b_img_ref[...]
    )
    proj_feat = jnp.tanh(
        jnp.dot(feat_ref[...], w_feat_ref[...], preferred_element_type=jnp.float32)
        + b_feat_ref[...]
    )

    # softmax over the 2 attention logits == sigmoid of the logit difference:
    #   d = logit1 - logit0
    #   w0 = 1 / (1 + exp(d)),  w1 = 1 - w0
    # Computed as VPU multiply + XLU row-reduce; no [TB, 2] intermediate and no
    # N=2 MXU matmul.
    d = (
        jnp.sum(proj_img * wa_img_diff_ref[...], axis=-1, keepdims=True)
        + jnp.sum(proj_feat * wa_feat_diff_ref[...], axis=-1, keepdims=True)
        + b_diff_ref[0, 0]
    )  # (TB, 1)
    w0 = 1.0 / (1.0 + jnp.exp(d))
    w1 = 1.0 - w0

    out_ref[...] = (w0 * proj_img + w1 * proj_feat).astype(out_ref.dtype)


def _pick_batch_tile(b, max_tile=256):
    for t in (max_tile, 128, 64, 32, 16, 8):
        if t <= b and b % t == 0:
            return t
    return b  # block == full array extent is always legal


def fusion_attention(image_features, extra_features, params, *, matmul_dtype=None):
    (w_img, b_img, w_feat, b_feat, w_attn, b_attn) = params
    B, Di = image_features.shape
    Df = extra_features.shape[1]
    Fd = w_img.shape[1]

    # Wrapper-side layout plumbing (free): reduce the 2-column attention head
    # to per-branch difference vectors, so the kernel never slices w_attn nor
    # touches a lane-width-2 tensor.
    wa_img_diff = (w_attn[:Fd, 1] - w_attn[:Fd, 0]).reshape(1, Fd).astype(jnp.float32)
    wa_feat_diff = (w_attn[Fd:, 1] - w_attn[Fd:, 0]).reshape(1, Fd).astype(jnp.float32)
    b_diff = (b_attn[1] - b_attn[0]).reshape(1, 1).astype(jnp.float32)

    # Optional bf16 matmul operands (v6e/v7x): halves HBM traffic, MXU still
    # accumulates in f32; biases / activations / softmax stay f32 (v5e-safe).
    if matmul_dtype is not None:
        image_features = image_features.astype(matmul_dtype)
        extra_features = extra_features.astype(matmul_dtype)
        w_img = w_img.astype(matmul_dtype)
        w_feat = w_feat.astype(matmul_dtype)

    tb = _pick_batch_tile(B)
    grid = (pl.cdiv(B, tb),)

    in_itemsize = jnp.dtype(image_features.dtype).itemsize

    # VMEM budget: double-buffered activation blocks + resident weights.
    block_bytes = 2 * tb * ((Di + Df) * in_itemsize + Fd * 4)
    resident_bytes = 2 * ((Di + Df) * Fd * in_itemsize + (3 * Fd + 2) * 4)
    vmem_limit = int(min(max(2 * (block_bytes + resident_bytes), 16 << 20), 48 << 20))

    flops = 2 * B * (Di + Df) * Fd + 8 * B * Fd
    transcendentals = 2 * B * Fd + B
    bytes_accessed = (
        B * (Di + Df) * in_itemsize
        + (Di + Df) * Fd * in_itemsize
        + B * Fd * 4
        + (3 * Fd + 2) * 4
    )

    return pl.pallas_call(
        fusion_attention_kernel,
        out_shape=jax.ShapeDtypeStruct((B, Fd), jnp.float32),
        grid=grid,
        in_specs=[
            pl.BlockSpec((1, 1), lambda i: (0, 0),
                         memory_space=pltpu.MemorySpace.SMEM),
            pl.BlockSpec((tb, Di), lambda i: (i, 0)),
            pl.BlockSpec((tb, Df), lambda i: (i, 0)),
            pl.BlockSpec((Di, Fd), lambda i: (0, 0)),
            pl.BlockSpec((1, Fd), lambda i: (0, 0)),
            pl.BlockSpec((Df, Fd), lambda i: (0, 0)),
            pl.BlockSpec((1, Fd), lambda i: (0, 0)),
            pl.BlockSpec((1, Fd), lambda i: (0, 0)),
            pl.BlockSpec((1, Fd), lambda i: (0, 0)),
        ],
        out_specs=pl.BlockSpec((tb, Fd), lambda i: (i, 0)),
        compiler_params=pltpu.CompilerParams(
            dimension_semantics=("parallel",),
            vmem_limit_bytes=vmem_limit,
        ),
        cost_estimate=pl.CostEstimate(
            flops=int(flops),
            transcendentals=int(transcendentals),
            bytes_accessed=int(bytes_accessed),
        ),
    )(
        b_diff,
        image_features,
        extra_features,
        w_img,
        b_img.reshape(1, Fd).astype(jnp.float32),
        w_feat,
        b_feat.reshape(1, Fd).astype(jnp.float32),
        wa_img_diff,
        wa_feat_diff,
    )


def init_params(key, image_dim, feature_dim, fusion_dim):
    """Deterministic synthetic parameters matching the PyTorch module shapes.

    PyTorch nn.Linear(in, out) holds weight [out, in]; we store the transpose
    [in, out] so the kernel computes x @ W + b directly.
    """
    k = jax.random.split(key, 6)
    w_img = jax.random.normal(k[0], (image_dim, fusion_dim), jnp.float32) * 0.1
    b_img = jax.random.normal(k[1], (fusion_dim,), jnp.float32) * 0.1
    w_feat = jax.random.normal(k[2], (feature_dim, fusion_dim), jnp.float32) * 0.1
    b_feat = jax.random.normal(k[3], (fusion_dim,), jnp.float32) * 0.1
    w_attn = jax.random.normal(k[4], (fusion_dim * 2, 2), jnp.float32) * 0.1
    b_attn = jax.random.normal(k[5], (2,), jnp.float32) * 0.1
    return (w_img, b_img, w_feat, b_feat, w_attn, b_attn)


def fusion_attention_ref(image_features, extra_features, params):
    """Pure-JAX reference mirroring the PyTorch forward pass."""
    (w_img, b_img, w_feat, b_feat, w_attn, b_attn) = params
    proj_img = jnp.tanh(image_features @ w_img + b_img)
    proj_feat = jnp.tanh(extra_features @ w_feat + b_feat)
    combined = jnp.concatenate([proj_img, proj_feat], axis=1)
    weights = jax.nn.softmax(combined @ w_attn + b_attn, axis=1)
    return weights[:, 0:1] * proj_img + weights[:, 1:2] * proj_feat


if __name__ == "__main__":
    B = 256
    image_dim = 128
    feature_dim = 64
    fusion_dim = 128   # lane-dense (multiple of 128) projection/output width

    key = jax.random.PRNGKey(0)
    k_img, k_feat, k_params = jax.random.split(key, 3)

    image_features = jax.random.normal(k_img, (B, image_dim), jnp.float32)
    extra_features = jax.random.normal(k_feat, (B, feature_dim), jnp.float32)
    params = init_params(k_params, image_dim, feature_dim, fusion_dim)

    ref = fusion_attention_ref(image_features, extra_features, params)

    # f32 path (all chips): strict check against the pure-JAX reference.
    out = jax.block_until_ready(
        fusion_attention(image_features, extra_features, params)
    )
    assert out.shape == (B, fusion_dim)
    assert jnp.allclose(out, ref, atol=1e-4, rtol=1e-4), float(
        jnp.max(jnp.abs(out - ref))
    )

    # bf16 matmul-operand path (v6e/v7x optimization): loose check.
    out_bf16 = jax.block_until_ready(
        fusion_attention(
            image_features, extra_features, params, matmul_dtype=jnp.bfloat16
        )
    )
    assert out_bf16.shape == (B, fusion_dim)
    assert jnp.allclose(out_bf16, ref, atol=1e-1, rtol=1e-1)

    print("KERNEL_OK")
</pallas_src>

<mosaic_0001>
module attributes {stable_mosaic.version = 11 : i64} {
  func.func @fusion_attention_kernel(%arg0: i32, %arg1: memref<1x1xf32, #tpu.memory_space<smem>>, %arg2: memref<256x128xf32, #tpu.memory_space<vmem>>, %arg3: memref<256x64xf32, #tpu.memory_space<vmem>>, %arg4: memref<128x128xf32, #tpu.memory_space<vmem>>, %arg5: memref<1x128xf32, #tpu.memory_space<vmem>>, %arg6: memref<64x128xf32, #tpu.memory_space<vmem>>, %arg7: memref<1x128xf32, #tpu.memory_space<vmem>>, %arg8: memref<1x128xf32, #tpu.memory_space<vmem>>, %arg9: memref<1x128xf32, #tpu.memory_space<vmem>>, %arg10: memref<256x128xf32, #tpu.memory_space<vmem>>) attributes {dimension_semantics = [#tpu.dimension_semantics<parallel>], iteration_bounds = array<i64: 1>, scalar_prefetch = 0 : i64, scratch_operands = 0 : i64, tpu.core_type = #tpu.core_type<tc>, window_params = [{transform_indices = @transform_0, window_bounds = array<i64: 1, 1>}, {transform_indices = @transform_1, window_bounds = array<i64: 256, 128>}, {transform_indices = @transform_2, window_bounds = array<i64: 256, 64>}, {pipeline_mode = #tpu.pipeline_mode<synchronous>, transform_indices = @transform_3, window_bounds = array<i64: 128, 128>}, {pipeline_mode = #tpu.pipeline_mode<synchronous>, transform_indices = @transform_4, window_bounds = array<i64: 1, 128>}, {pipeline_mode = #tpu.pipeline_mode<synchronous>, transform_indices = @transform_5, window_bounds = array<i64: 64, 128>}, {pipeline_mode = #tpu.pipeline_mode<synchronous>, transform_indices = @transform_6, window_bounds = array<i64: 1, 128>}, {pipeline_mode = #tpu.pipeline_mode<synchronous>, transform_indices = @transform_7, window_bounds = array<i64: 1, 128>}, {pipeline_mode = #tpu.pipeline_mode<synchronous>, transform_indices = @transform_8, window_bounds = array<i64: 1, 128>}, {transform_indices = @transform_9, window_bounds = array<i64: 256, 128>}]} {
    %c0 = arith.constant 0 : index
    %c0_0 = arith.constant 0 : index
    %0 = vector.load %arg2[%c0, %c0_0] : memref<256x128xf32, #tpu.memory_space<vmem>>, vector<256x128xf32>
    %c0_1 = arith.constant 0 : index
    %c0_2 = arith.constant 0 : index
    %1 = vector.load %arg4[%c0_1, %c0_2] : memref<128x128xf32, #tpu.memory_space<vmem>>, vector<128x128xf32>
    %cst = arith.constant dense<0.000000e+00> : vector<256x128xf32>
    %2 = tpu.matmul %0, %1, %cst {dimension_numbers = #tpu.dot_dimension_numbers<[1], [0], [0], [1], [0, 0, 1, 1], [], []>} : vector<256x128xf32>, vector<128x128xf32>, vector<256x128xf32> -> vector<256x128xf32>
    %c0_3 = arith.constant 0 : index
    %c0_4 = arith.constant 0 : index
    %3 = vector.load %arg5[%c0_3, %c0_4] : memref<1x128xf32, #tpu.memory_space<vmem>>, vector<1x128xf32>
    %4 = vector.broadcast %3 : vector<1x128xf32> to vector<256x128xf32>
    %5 = arith.addf %2, %4 : vector<256x128xf32>
    %6 = math.tanh %5 : vector<256x128xf32>
    %c0_5 = arith.constant 0 : index
    %c0_6 = arith.constant 0 : index
    %7 = vector.load %arg3[%c0_5, %c0_6] : memref<256x64xf32, #tpu.memory_space<vmem>>, vector<256x64xf32>
    %c0_7 = arith.constant 0 : index
    %c0_8 = arith.constant 0 : index
    %8 = vector.load %arg6[%c0_7, %c0_8] : memref<64x128xf32, #tpu.memory_space<vmem>>, vector<64x128xf32>
    %cst_9 = arith.constant dense<0.000000e+00> : vector<256x128xf32>
    %9 = tpu.matmul %7, %8, %cst_9 {dimension_numbers = #tpu.dot_dimension_numbers<[1], [0], [0], [1], [0, 0, 1, 1], [], []>} : vector<256x64xf32>, vector<64x128xf32>, vector<256x128xf32> -> vector<256x128xf32>
    %c0_10 = arith.constant 0 : index
    %c0_11 = arith.constant 0 : index
    %10 = vector.load %arg7[%c0_10, %c0_11] : memref<1x128xf32, #tpu.memory_space<vmem>>, vector<1x128xf32>
    %11 = vector.broadcast %10 : vector<1x128xf32> to vector<256x128xf32>
    %12 = arith.addf %9, %11 : vector<256x128xf32>
    %13 = math.tanh %12 : vector<256x128xf32>
    %c0_12 = arith.constant 0 : index
    %c0_13 = arith.constant 0 : index
    %14 = vector.load %arg8[%c0_12, %c0_13] : memref<1x128xf32, #tpu.memory_space<vmem>>, vector<1x128xf32>
    %15 = vector.broadcast %14 : vector<1x128xf32> to vector<256x128xf32>
    %16 = arith.mulf %6, %15 : vector<256x128xf32>
    %cst_14 = arith.constant dense<0.000000e+00> : vector<256xf32>
    %17 = vector.multi_reduction <add>, %16, %cst_14 [1] : vector<256x128xf32> to vector<256xf32>
    %18 = vector.shape_cast %17 : vector<256xf32> to vector<256x1xf32>
    %c0_15 = arith.constant 0 : index
    %c0_16 = arith.constant 0 : index
    %19 = vector.load %arg9[%c0_15, %c0_16] : memref<1x128xf32, #tpu.memory_space<vmem>>, vector<1x128xf32>
    %20 = vector.broadcast %19 : vector<1x128xf32> to vector<256x128xf32>
    %21 = arith.mulf %13, %20 : vector<256x128xf32>
    %cst_17 = arith.constant dense<0.000000e+00> : vector<256xf32>
    %22 = vector.multi_reduction <add>, %21, %cst_17 [1] : vector<256x128xf32> to vector<256xf32>
    %23 = vector.shape_cast %22 : vector<256xf32> to vector<256x1xf32>
    %24 = arith.addf %18, %23 : vector<256x1xf32>
    %c0_18 = arith.constant 0 : index
    %c0_19 = arith.constant 0 : index
    %25 = memref.load %arg1[%c0_18, %c0_19] : memref<1x1xf32, #tpu.memory_space<smem>>
    %26 = vector.broadcast %25 : f32 to vector<256x1xf32>
    %27 = arith.addf %24, %26 : vector<256x1xf32>
    %28 = math.exp %27 : vector<256x1xf32>
    %cst_20 = arith.constant 1.000000e+00 : f32
    %29 = vector.broadcast %cst_20 : f32 to vector<256x1xf32>
    %30 = arith.addf %29, %28 : vector<256x1xf32>
    %cst_21 = arith.constant 1.000000e+00 : f32
    %31 = vector.broadcast %cst_21 : f32 to vector<256x1xf32>
    %32 = arith.divf %31, %30 : vector<256x1xf32>
    %cst_22 = arith.constant 1.000000e+00 : f32
    %33 = vector.broadcast %cst_22 : f32 to vector<256x1xf32>
    %34 = arith.subf %33, %32 : vector<256x1xf32>
    %35 = vector.broadcast %32 : vector<256x1xf32> to vector<256x128xf32>
    %36 = arith.mulf %35, %6 : vector<256x128xf32>
    %37 = vector.broadcast %34 : vector<256x1xf32> to vector<256x128xf32>
    %38 = arith.mulf %37, %13 : vector<256x128xf32>
    %39 = arith.addf %36, %38 : vector<256x128xf32>
    %c0_23 = arith.constant 0 : index
    %c0_24 = arith.constant 0 : index
    %40 = vector.load %arg10[%c0_23, %c0_24] : memref<256x128xf32, #tpu.memory_space<vmem>>, vector<256x128xf32>
    tpu.vector_store %arg10[%c0_23, %c0_24], %39 {strides = array<i32>} : memref<256x128xf32, #tpu.memory_space<vmem>>, vector<256x128xf32>,
    return
  }
  func.func @transform_0(%arg0: i32) -> (i32, i32) {
    %c0_i32 = arith.constant 0 : i32
    %c0_i32_0 = arith.constant 0 : i32
    %c0_i32_1 = arith.constant 0 : i32
    return %c0_i32, %c0_i32_0 : i32, i32
  }
  func.func @transform_1(%arg0: i32) -> (i32, i32) {
    %c0_i32 = arith.constant 0 : i32
    %c0_i32_0 = arith.constant 0 : i32
    return %arg0, %c0_i32 : i32, i32
  }
  func.func @transform_2(%arg0: i32) -> (i32, i32) {
    %c0_i32 = arith.constant 0 : i32
    %c0_i32_0 = arith.constant 0 : i32
    return %arg0, %c0_i32 : i32, i32
  }
  func.func @transform_3(%arg0: i32) -> (i32, i32) {
    %c0_i32 = arith.constant 0 : i32
    %c0_i32_0 = arith.constant 0 : i32
    %c0_i32_1 = arith.constant 0 : i32
    return %c0_i32, %c0_i32_0 : i32, i32
  }
  func.func @transform_4(%arg0: i32) -> (i32, i32) {
    %c0_i32 = arith.constant 0 : i32
    %c0_i32_0 = arith.constant 0 : i32
    %c0_i32_1 = arith.constant 0 : i32
    return %c0_i32, %c0_i32_0 : i32, i32
  }
  func.func @transform_5(%arg0: i32) -> (i32, i32) {
    %c0_i32 = arith.constant 0 : i32
    %c0_i32_0 = arith.constant 0 : i32
    %c0_i32_1 = arith.constant 0 : i32
    return %c0_i32, %c0_i32_0 : i32, i32
  }
  func.func @transform_6(%arg0: i32) -> (i32, i32) {
    %c0_i32 = arith.constant 0 : i32
    %c0_i32_0 = arith.constant 0 : i32
    %c0_i32_1 = arith.constant 0 : i32
    return %c0_i32, %c0_i32_0 : i32, i32
  }
  func.func @transform_7(%arg0: i32) -> (i32, i32) {
    %c0_i32 = arith.constant 0 : i32
    %c0_i32_0 = arith.constant 0 : i32
    %c0_i32_1 = arith.constant 0 : i32
    return %c0_i32, %c0_i32_0 : i32, i32
  }
  func.func @transform_8(%arg0: i32) -> (i32, i32) {
    %c0_i32 = arith.constant 0 : i32
    %c0_i32_0 = arith.constant 0 : i32
    %c0_i32_1 = arith.constant 0 : i32
    return %c0_i32, %c0_i32_0 : i32, i32
  }
  func.func @transform_9(%arg0: i32) -> (i32, i32) {
    %c0_i32 = arith.constant 0 : i32
    %c0_i32_0 = arith.constant 0 : i32
    return %arg0, %c0_i32 : i32, i32
  }
}

</mosaic_0001>

<llo_original>
// kernel: tpu_custom_call.1
$region0: #{tpu_custom_call.1}
  #allocation0 [shape = 'u32[]', space=smem, size = 0x4, offset = 0x4, fixed_abs, tag = 'smem constant byte address 0x4 - core index']
  #allocation1 [shape = 'u32[144,128]{1,0:T(1,128)}', space=vmem, size = 0x12000, scoped, tag = 'internal scratch']
  #allocation2 [shape = 'f32[1,1]{1,0:T(1,128)S(6)}', space=smem, size = 0x200, scoped, tag = 'scoped memory for tpu_custom_call.1']
  %s0 = inlined_call_operand.<no memory space> [shape: f32[1,1], index: 0, kind: input, shape index: {}]
  %s1 = inlined_call_operand.vmem [shape: f32[256,128], index: 1, kind: input, shape index: {}]
  %s2 = inlined_call_operand.vmem [shape: f32[256,64], index: 2, kind: input, shape index: {}]
  %s3 = inlined_call_operand.vmem [shape: f32[128,128], index: 3, kind: input, shape index: {}]
  %s4 = inlined_call_operand.vmem [shape: f32[1,128], index: 4, kind: input, shape index: {}]
  %s5 = inlined_call_operand.hbm [shape: f32[64,128], index: 5, kind: input, shape index: {}]
  %s6 = inlined_call_operand.vmem [shape: f32[1,128], index: 6, kind: input, shape index: {}]
  %s7 = inlined_call_operand.vmem [shape: f32[1,128], index: 7, kind: input, shape index: {}]
  %s8 = inlined_call_operand.vmem [shape: f32[1,128], index: 8, kind: input, shape index: {}]
  %s9 = inlined_call_operand.hbm [shape: f32[256,128], index: 9, kind: output, shape index: {}]
  %s10 = sld [smem:[#allocation0]]
  $region50: #{tpu_custom_call.1} parent=0
    _
  %s12 = ssub.s32 1, %s10
  %s13 = scalar_select 0, %s12, %s10
  %14 = sst [smem:[#allocation2]] %s0
  $region1: #{tpu_custom_call.1} parent=0
    #allocation3 [shape = 'u8[32768]{0}', space=vmem, size = 0x8000, scoped, tag = 'input window, operand 5, single buffered']
    #allocation4 [shape = 's32[1]{0}', space=sflag, size = 0x4, scoped, tag = 'scoped memory for tpu_custom_call.1']
    #allocation5 [shape = 's32[1]{0}', space=sflag, size = 0x4, scoped, tag = 'scoped memory for tpu_custom_call.1']
    #allocation6 [shape = 'u8[131072]{0}', space=vmem, size = 0x20000, scoped, tag = 'output window, operand 0, single buffered']
    %15 = vsyncpa [#allocation4], 0
    %16 = vsyncpa [#allocation5], 0
    // Predicated region
    $region2: #{tpu_custom_call.1} parent=1 // pred_check
      _
    $region3: #{tpu_custom_call.1} parent=1 // pred_check_branch
      %18 = sbr.rel (0) target = $region5
    $region4: #{tpu_custom_call.1} parent=1 // pred_region
      _
    $region5: #{tpu_custom_call.1} parent=1 // pred_fallthru
      _
    // Predicated region
    $region6: #{tpu_custom_call.1} parent=1 // pred_check
      _
    $region7: #{tpu_custom_call.1} parent=1 // pred_check_branch
      %20 = sbr.rel (0) target = $region9
    $region8: #{tpu_custom_call.1} parent=1 // pred_region
      _
    $region9: #{tpu_custom_call.1} parent=1 // pred_fallthru
      _
    // Predicated region
    $region10: #{tpu_custom_call.1} parent=1 // pred_check
      _
    $region11: #{tpu_custom_call.1} parent=1 // pred_check_branch
      %22 = sbr.rel (0) target = $region13
    $region12: #{tpu_custom_call.1} parent=1 // pred_region
      _
    $region13: #{tpu_custom_call.1} parent=1 // pred_fallthru
      _
    // Predicated region
    $region14: #{tpu_custom_call.1} parent=1 // pred_check
      _
    $region15: #{tpu_custom_call.1} parent=1 // pred_check_branch
      %24 = sbr.rel (0) target = $region17
    $region16: #{tpu_custom_call.1} parent=1 // pred_region
      _
    $region17: #{tpu_custom_call.1} parent=1 // pred_fallthru
      _
    // Predicated region
    $region18: #{tpu_custom_call.1} parent=1 // pred_check
      _
    $region19: #{tpu_custom_call.1} parent=1 // pred_check_branch
      %26 = sbr.rel (0) target = $region21
    $region20: #{tpu_custom_call.1} parent=1 // pred_region
      _
    $region21: #{tpu_custom_call.1} parent=1 // pred_fallthru
      _
    // Predicated region
    $region22: #{tpu_custom_call.1} parent=1 // pred_check
      _
    $region23: #{tpu_custom_call.1} parent=1 // pred_check_branch
      %28 = sbr.rel (0) target = $region25
    $region24: #{tpu_custom_call.1} parent=1 // pred_region
      %s30 = ssub.s32 1024, 1024
      %31 = vsyncadd [#allocation4], %s30
      %s32 = sshll.u32 [#allocation3], 4
      %s33 = int_to_ptr.vmem [resolvable:$true] %s32
      %38 = dma.hbm_to_vmem [thread:$0]  %s5, 1024, %s33, [#allocation4], 128, 128, 8
    $region25: #{tpu_custom_call.1} parent=1 // pred_fallthru
      _
    // Predicated region
    $region26: #{tpu_custom_call.1} parent=1 // pred_check
      _
    $region27: #{tpu_custom_call.1} parent=1 // pred_check_branch
      %40 = sbr.rel (0) target = $region29
    $region28: #{tpu_custom_call.1} parent=1 // pred_region
      _
    $region29: #{tpu_custom_call.1} parent=1 // pred_fallthru
      _
    // Predicated region
    $region30: #{tpu_custom_call.1} parent=1 // pred_check
      _
    $region31: #{tpu_custom_call.1} parent=1 // pred_check_branch
      %42 = sbr.rel (0) target = $region33
    $region32: #{tpu_custom_call.1} parent=1 // pred_region
      _
    $region33: #{tpu_custom_call.1} parent=1 // pred_fallthru
      _
    // Predicated region
    $region34: #{tpu_custom_call.1} parent=1 // pred_check
      _
    $region35: #{tpu_custom_call.1} parent=1 // pred_check_branch
      %44 = sbr.rel (0) target = $region37
    $region36: #{tpu_custom_call.1} parent=1 // pred_region
      _
    $region37: #{tpu_custom_call.1} parent=1 // pred_fallthru
      _
    // Predicated region
    $region38: #{tpu_custom_call.1} parent=1 // pred_check
      _
    $region39: #{tpu_custom_call.1} parent=1 // pred_check_branch
      %46 = sbr.rel (0) target = $region41
    $region40: #{tpu_custom_call.1} parent=1 // pred_region
      %47 = dma.done [#allocation4], 1024
    $region41: #{tpu_custom_call.1} parent=1 // pred_fallthru
      _
    %v48 = vld [vmem:[%s1] sm:$0xff]
    %v49 = vld [vmem:[%s1 + $0x8] sm:$0xff]
    %v50 = vld [vmem:[%s1 + $0x10] sm:$0xff]
    %v51 = vld [vmem:[%s1 + $0x18] sm:$0xff]
    %v52 = vld [vmem:[%s1 + $0x20] sm:$0xff]
    %v53 = vld [vmem:[%s1 + $0x28] sm:$0xff]
    %v54 = vld [vmem:[%s1 + $0x30] sm:$0xff]
    %v55 = vld [vmem:[%s1 + $0x38] sm:$0xff]
    %v56 = vld [vmem:[%s1 + $0x40] sm:$0xff]
    %v57 = vld [vmem:[%s1 + $0x48] sm:$0xff]
    %v58 = vld [vmem:[%s1 + $0x50] sm:$0xff]
    %v59 = vld [vmem:[%s1 + $0x58] sm:$0xff]
    %v60 = vld [vmem:[%s1 + $0x60] sm:$0xff]
    %v61 = vld [vmem:[%s1 + $0x68] sm:$0xff]
    %v62 = vld [vmem:[%s1 + $0x70] sm:$0xff]
    %v63 = vld [vmem:[%s1 + $0x78] sm:$0xff]
    %v64 = vld [vmem:[%s1 + $0x80] sm:$0xff]
    %v65 = vld [vmem:[%s1 + $0x88] sm:$0xff]
    %v66 = vld [vmem:[%s1 + $0x90] sm:$0xff]
    %v67 = vld [vmem:[%s1 + $0x98] sm:$0xff]
    %v68 = vld [vmem:[%s1 + $0xa0] sm:$0xff]
    %v69 = vld [vmem:[%s1 + $0xa8] sm:$0xff]
    %v70 = vld [vmem:[%s1 + $0xb0] sm:$0xff]
    %v71 = vld [vmem:[%s1 + $0xb8] sm:$0xff]
    %v72 = vld [vmem:[%s1 + $0xc0] sm:$0xff]
    %v73 = vld [vmem:[%s1 + $0xc8] sm:$0xff]
    %v74 = vld [vmem:[%s1 + $0xd0] sm:$0xff]
    %v75 = vld [vmem:[%s1 + $0xd8] sm:$0xff]
    %v76 = vld [vmem:[%s1 + $0xe0] sm:$0xff]
    %v77 = vld [vmem:[%s1 + $0xe8] sm:$0xff]
    %v78 = vld [vmem:[%s1 + $0xf0] sm:$0xff]
    %v79 = vld [vmem:[%s1 + $0xf8] sm:$0xff]
    %v80 = vld [vmem:[%s3] sm:$0xff]
    %v81 = vld [vmem:[%s3 + $0x8] sm:$0xff]
    %v82 = vld [vmem:[%s3 + $0x10] sm:$0xff]
    %v83 = vld [vmem:[%s3 + $0x18] sm:$0xff]
    %v84 = vld [vmem:[%s3 + $0x20] sm:$0xff]
    %v85 = vld [vmem:[%s3 + $0x28] sm:$0xff]
    %v86 = vld [vmem:[%s3 + $0x30] sm:$0xff]
    %v87 = vld [vmem:[%s3 + $0x38] sm:$0xff]
    %v88 = vld [vmem:[%s3 + $0x40] sm:$0xff]
    %v89 = vld [vmem:[%s3 + $0x48] sm:$0xff]
    %v90 = vld [vmem:[%s3 + $0x50] sm:$0xff]
    %v91 = vld [vmem:[%s3 + $0x58] sm:$0xff]
    %v92 = vld [vmem:[%s3 + $0x60] sm:$0xff]
    %v93 = vld [vmem:[%s3 + $0x68] sm:$0xff]
    %v94 = vld [vmem:[%s3 + $0x70] sm:$0xff]
    %v95 = vld [vmem:[%s3 + $0x78] sm:$0xff]
    %v96 = vld [vmem:[%s4] sm:$0x1]
    %v98 = vlaneseq
    %v99 = vshrl.u32 %v98, 7
    %v100 = vsub.s32 0, %v99
    %v101 = vrot.slane %v96, %v100
    %103 = vmatprep.subr.mxu0 0.0
    %104 = vmatpush1.msra.mxu0 %v95
    %105 = vmatprep.subr.mxu0 0.0
    %106 = vmatpush1.msra.mxu0 %v94
    %107 = vmatprep.subr.mxu0 0.0
    %108 = vmatpush1.msra.mxu0 %v93
    %109 = vmatprep.subr.mxu0 0.0
    %110 = vmatpush1.msra.mxu0 %v92
    %111 = vmatprep.subr.mxu0 0.0
    %112 = vmatpush1.msra.mxu0 %v91
    %113 = vmatprep.subr.mxu0 0.0
    %114 = vmatpush1.msra.mxu0 %v90
    %115 = vmatprep.subr.mxu0 0.0
    %116 = vmatpush1.msra.mxu0 %v89
    %117 = vmatprep.subr.mxu0 0.0
    %118 = vmatpush1.msra.mxu0 %v88
    %119 = vmatprep.subr.mxu0 0.0
    %120 = vmatpush1.msra.mxu0 %v87
    %121 = vmatprep.subr.mxu0 0.0
    %122 = vmatpush1.msra.mxu0 %v86
    %123 = vmatprep.subr.mxu0 0.0
    %124 = vmatpush1.msra.mxu0 %v85
    %125 = vmatprep.subr.mxu0 0.0
    %126 = vmatpush1.msra.mxu0 %v84
    %127 = vmatprep.subr.mxu0 0.0
    %128 = vmatpush1.msra.mxu0 %v83
    %129 = vmatprep.subr.mxu0 0.0
    %130 = vmatpush1.msra.mxu0 %v82
    %131 = vmatprep.subr.mxu0 0.0
    %132 = vmatpush1.msra.mxu0 %v81
    %133 = vmatprep.subr.mxu0 0.0
    %134 = vmatpush1.msra.mxu0 %v80
    %135 = vmatprep.subr.mxu0 0.0
    %136 = vmatpush2.msra.mxu0 0.0
    %137 = vmatprep.subr.mxu0 0.0
    %138 = vmatpush2.msra.mxu0 0.0
    %139 = vmatprep.subr.mxu0 0.0
    %140 = vmatpush2.msra.mxu0 0.0
    %141 = vmatprep.subr.mxu0 0.0
    %142 = vmatpush2.msra.mxu0 0.0
    %143 = vmatprep.subr.mxu0 0.0
    %144 = vmatpush2.msra.mxu0 0.0
    %145 = vmatprep.subr.mxu0 0.0
    %146 = vmatpush2.msra.mxu0 0.0
    %147 = vmatprep.subr.mxu0 0.0
    %148 = vmatpush2.msra.mxu0 0.0
    %149 = vmatprep.subr.mxu0 0.0
    %150 = vmatpush2.msra.mxu0 0.0
    %151 = vmatprep.subr.mxu0 0.0
    %152 = vmatpush2.msra.mxu0 0.0
    %153 = vmatprep.subr.mxu0 0.0
    %154 = vmatpush2.msra.mxu0 0.0
    %155 = vmatprep.subr.mxu0 0.0
    %156 = vmatpush2.msra.mxu0 0.0
    %157 = vmatprep.subr.mxu0 0.0
    %158 = vmatpush2.msra.mxu0 0.0
    %159 = vmatprep.subr.mxu0 0.0
    %160 = vmatpush2.msra.mxu0 0.0
    %161 = vmatprep.subr.mxu0 0.0
    %162 = vmatpush2.msra.mxu0 0.0
    %163 = vmatprep.subr.mxu0 0.0
    %164 = vmatpush2.msra.mxu0 0.0
    %165 = vmatprep.subr.mxu0 0.0
    %166 = vmatpush2.msra.mxu0 0.0
    %167 = vmatprep.mubr.f32.mxu0 0.0
    %168 = vmatmul.mubr.f32.gmra.mxu0 %v48
    %v169 = vpop.f32.mrf.mxu0
    %v170 = vadd.f32 %v101, %v169
    %v171 = vpop.f32.mrf.mxu0
    %172 = vmatprep.mubr.f32.mxu0 0.0
    %173 = vmatmul.mubr.f32.gmra.mxu0 %v49
    %v174 = vpop.f32.mrf.mxu0
    %v175 = vadd.f32 %v101, %v174
    %v176 = vpop.f32.mrf.mxu0
    %177 = vmatprep.mubr.f32.mxu0 0.0
    %178 = vmatmul.mubr.f32.gmra.mxu0 %v50
    %v179 = vpop.f32.mrf.mxu0
    %v180 = vadd.f32 %v101, %v179
    %v181 = vpop.f32.mrf.mxu0
    %182 = vmatprep.mubr.f32.mxu0 0.0
    %183 = vmatmul.mubr.f32.gmra.mxu0 %v51
    %v184 = vpop.f32.mrf.mxu0
    %v185 = vadd.f32 %v101, %v184
    %v186 = vpop.f32.mrf.mxu0
    %187 = vmatprep.mubr.f32.mxu0 0.0
    %188 = vmatmul.mubr.f32.gmra.mxu0 %v52
    %v189 = vpop.f32.mrf.mxu0
    %v190 = vadd.f32 %v101, %v189
    %v191 = vpop.f32.mrf.mxu0
    %192 = vmatprep.mubr.f32.mxu0 0.0
    %193 = vmatmul.mubr.f32.gmra.mxu0 %v53
    %v194 = vpop.f32.mrf.mxu0
    %v195 = vadd.f32 %v101, %v194
    %v196 = vpop.f32.mrf.mxu0
    %197 = vmatprep.mubr.f32.mxu0 0.0
    %198 = vmatmul.mubr.f32.gmra.mxu0 %v54
    %v199 = vpop.f32.mrf.mxu0
    %v200 = vadd.f32 %v101, %v199
    %v201 = vpop.f32.mrf.mxu0
    %202 = vmatprep.mubr.f32.mxu0 0.0
    %203 = vmatmul.mubr.f32.gmra.mxu0 %v55
    %v204 = vpop.f32.mrf.mxu0
    %v205 = vadd.f32 %v101, %v204
    %v206 = vpop.f32.mrf.mxu0
    %207 = vmatprep.mubr.f32.mxu0 0.0
    %208 = vmatmul.mubr.f32.gmra.mxu0 %v56
    %v209 = vpop.f32.mrf.mxu0
    %v210 = vadd.f32 %v101, %v209
    %v211 = vpop.f32.mrf.mxu0
    %212 = vmatprep.mubr.f32.mxu0 0.0
    %213 = vmatmul.mubr.f32.gmra.mxu0 %v57
    %v214 = vpop.f32.mrf.mxu0
    %v215 = vadd.f32 %v101, %v214
    %v216 = vpop.f32.mrf.mxu0
    %217 = vmatprep.mubr.f32.mxu0 0.0
    %218 = vmatmul.mubr.f32.gmra.mxu0 %v58
    %v219 = vpop.f32.mrf.mxu0
    %v220 = vadd.f32 %v101, %v219
    %v221 = vpop.f32.mrf.mxu0
    %222 = vmatprep.mubr.f32.mxu0 0.0
    %223 = vmatmul.mubr.f32.gmra.mxu0 %v59
    %v224 = vpop.f32.mrf.mxu0
    %v225 = vadd.f32 %v101, %v224
    %v226 = vpop.f32.mrf.mxu0
    %227 = vmatprep.mubr.f32.mxu0 0.0
    %228 = vmatmul.mubr.f32.gmra.mxu0 %v60
    %v229 = vpop.f32.mrf.mxu0
    %v230 = vadd.f32 %v101, %v229
    %v231 = vpop.f32.mrf.mxu0
    %232 = vmatprep.mubr.f32.mxu0 0.0
    %233 = vmatmul.mubr.f32.gmra.mxu0 %v61
    %v234 = vpop.f32.mrf.mxu0
    %v235 = vadd.f32 %v101, %v234
    %v236 = vpop.f32.mrf.mxu0
    %237 = vmatprep.mubr.f32.mxu0 0.0
    %238 = vmatmul.mubr.f32.gmra.mxu0 %v62
    %v239 = vpop.f32.mrf.mxu0
    %v240 = vadd.f32 %v101, %v239
    %v241 = vpop.f32.mrf.mxu0
    %242 = vmatprep.mubr.f32.mxu0 0.0
    %243 = vmatmul.mubr.f32.gmra.mxu0 %v63
    %v244 = vpop.f32.mrf.mxu0
    %v245 = vadd.f32 %v101, %v244
    %v246 = vpop.f32.mrf.mxu0
    %247 = vmatprep.mubr.f32.mxu0 0.0
    %248 = vmatmul.mubr.f32.gmra.mxu0 %v64
    %v249 = vpop.f32.mrf.mxu0
    %v250 = vadd.f32 %v101, %v249
    %v251 = vpop.f32.mrf.mxu0
    %252 = vmatprep.mubr.f32.mxu0 0.0
    %253 = vmatmul.mubr.f32.gmra.mxu0 %v65
    %v254 = vpop.f32.mrf.mxu0
    %v255 = vadd.f32 %v101, %v254
    %v256 = vpop.f32.mrf.mxu0
    %257 = vmatprep.mubr.f32.mxu0 0.0
    %258 = vmatmul.mubr.f32.gmra.mxu0 %v66
    %v259 = vpop.f32.mrf.mxu0
    %v260 = vadd.f32 %v101, %v259
    %v261 = vpop.f32.mrf.mxu0
    %262 = vmatprep.mubr.f32.mxu0 0.0
    %263 = vmatmul.mubr.f32.gmra.mxu0 %v67
    %v264 = vpop.f32.mrf.mxu0
    %v265 = vadd.f32 %v101, %v264
    %v266 = vpop.f32.mrf.mxu0
    %267 = vmatprep.mubr.f32.mxu0 0.0
    %268 = vmatmul.mubr.f32.gmra.mxu0 %v68
    %v269 = vpop.f32.mrf.mxu0
    %v270 = vadd.f32 %v101, %v269
    %v271 = vpop.f32.mrf.mxu0
    %272 = vmatprep.mubr.f32.mxu0 0.0
    %273 = vmatmul.mubr.f32.gmra.mxu0 %v69
    %v274 = vpop.f32.mrf.mxu0
    %v275 = vadd.f32 %v101, %v274
    %v276 = vpop.f32.mrf.mxu0
    %277 = vmatprep.mubr.f32.mxu0 0.0
    %278 = vmatmul.mubr.f32.gmra.mxu0 %v70
    %v279 = vpop.f32.mrf.mxu0
    %v280 = vadd.f32 %v101, %v279
    %v281 = vpop.f32.mrf.mxu0
    %282 = vmatprep.mubr.f32.mxu0 0.0
    %283 = vmatmul.mubr.f32.gmra.mxu0 %v71
    %v284 = vpop.f32.mrf.mxu0
    %v285 = vadd.f32 %v101, %v284
    %v286 = vpop.f32.mrf.mxu0
    %287 = vmatprep.mubr.f32.mxu0 0.0
    %288 = vmatmul.mubr.f32.gmra.mxu0 %v72
    %v289 = vpop.f32.mrf.mxu0
    %v290 = vadd.f32 %v101, %v289
    %v291 = vpop.f32.mrf.mxu0
    %292 = vmatprep.mubr.f32.mxu0 0.0
    %293 = vmatmul.mubr.f32.gmra.mxu0 %v73
    %v294 = vpop.f32.mrf.mxu0
    %v295 = vadd.f32 %v101, %v294
    %v296 = vpop.f32.mrf.mxu0
    %297 = vmatprep.mubr.f32.mxu0 0.0
    %298 = vmatmul.mubr.f32.gmra.mxu0 %v74
    %v299 = vpop.f32.mrf.mxu0
    %v300 = vadd.f32 %v101, %v299
    %v301 = vpop.f32.mrf.mxu0
    %302 = vmatprep.mubr.f32.mxu0 0.0
    %303 = vmatmul.mubr.f32.gmra.mxu0 %v75
    %v304 = vpop.f32.mrf.mxu0
    %v305 = vadd.f32 %v101, %v304
    %v306 = vpop.f32.mrf.mxu0
    %307 = vmatprep.mubr.f32.mxu0 0.0
    %308 = vmatmul.mubr.f32.gmra.mxu0 %v76
    %v309 = vpop.f32.mrf.mxu0
    %v310 = vadd.f32 %v101, %v309
    %v311 = vpop.f32.mrf.mxu0
    %312 = vmatprep.mubr.f32.mxu0 0.0
    %313 = vmatmul.mubr.f32.gmra.mxu0 %v77
    %v314 = vpop.f32.mrf.mxu0
    %v315 = vadd.f32 %v101, %v314
    %v316 = vpop.f32.mrf.mxu0
    %317 = vmatprep.mubr.f32.mxu0 0.0
    %318 = vmatmul.mubr.f32.gmra.mxu0 %v78
    %v319 = vpop.f32.mrf.mxu0
    %v320 = vadd.f32 %v101, %v319
    %v321 = vpop.f32.mrf.mxu0
    %322 = vmatprep.mubr.f32.mxu0 0.0
    %323 = vmatmul.mubr.f32.gmra.mxu0 %v79
    %v324 = vpop.f32.mrf.mxu0
    %v325 = vadd.f32 %v101, %v324
    %v326 = vpop.f32.mrf.mxu0
    %327 = vdwg.mxu0
    %v328 = vtanh.pop %v170
    %v329 = vtanh.pop %v175
    %v330 = vtanh.pop %v180
    %v331 = vtanh.pop %v185
    %v332 = vtanh.pop %v190
    %v333 = vtanh.pop %v195
    %v334 = vtanh.pop %v200
    %v335 = vtanh.pop %v205
    %v336 = vtanh.pop %v210
    %v337 = vtanh.pop %v215
    %v338 = vtanh.pop %v220
    %v339 = vtanh.pop %v225
    %v340 = vtanh.pop %v230
    %v341 = vtanh.pop %v235
    %v342 = vtanh.pop %v240
    %v343 = vtanh.pop %v245
    %v344 = vtanh.pop %v250
    %v345 = vtanh.pop %v255
    %v346 = vtanh.pop %v260
    %v347 = vtanh.pop %v265
    %v348 = vtanh.pop %v270
    %v349 = vtanh.pop %v275
    %v350 = vtanh.pop %v280
    %v351 = vtanh.pop %v285
    %v352 = vtanh.pop %v290
    %v353 = vtanh.pop %v295
    %v354 = vtanh.pop %v300
    %v355 = vtanh.pop %v305
    %v356 = vtanh.pop %v310
    %v357 = vtanh.pop %v315
    %v358 = vtanh.pop %v320
    %v359 = vtanh.pop %v325
    %v360 = vld [vmem:[%s2] sm:$0xff]
    %v361 = vld [vmem:[%s2 + $0x8] sm:$0xff]
    %v362 = vld [vmem:[%s2 + $0x10] sm:$0xff]
    %v363 = vld [vmem:[%s2 + $0x18] sm:$0xff]
    %v364 = vld [vmem:[%s2 + $0x20] sm:$0xff]
    %v365 = vld [vmem:[%s2 + $0x28] sm:$0xff]
    %v366 = vld [vmem:[%s2 + $0x30] sm:$0xff]
    %v367 = vld [vmem:[%s2 + $0x38] sm:$0xff]
    %v368 = vld [vmem:[%s2 + $0x40] sm:$0xff]
    %v369 = vld [vmem:[%s2 + $0x48] sm:$0xff]
    %v370 = vld [vmem:[%s2 + $0x50] sm:$0xff]
    %v371 = vld [vmem:[%s2 + $0x58] sm:$0xff]
    %v372 = vld [vmem:[%s2 + $0x60] sm:$0xff]
    %v373 = vld [vmem:[%s2 + $0x68] sm:$0xff]
    %v374 = vld [vmem:[%s2 + $0x70] sm:$0xff]
    %v375 = vld [vmem:[%s2 + $0x78] sm:$0xff]
    %v376 = vld [vmem:[%s2 + $0x80] sm:$0xff]
    %v377 = vld [vmem:[%s2 + $0x88] sm:$0xff]
    %v378 = vld [vmem:[%s2 + $0x90] sm:$0xff]
    %v379 = vld [vmem:[%s2 + $0x98] sm:$0xff]
    %v380 = vld [vmem:[%s2 + $0xa0] sm:$0xff]
    %v381 = vld [vmem:[%s2 + $0xa8] sm:$0xff]
    %v382 = vld [vmem:[%s2 + $0xb0] sm:$0xff]
    %v383 = vld [vmem:[%s2 + $0xb8] sm:$0xff]
    %v384 = vld [vmem:[%s2 + $0xc0] sm:$0xff]
    %v385 = vld [vmem:[%s2 + $0xc8] sm:$0xff]
    %v386 = vld [vmem:[%s2 + $0xd0] sm:$0xff]
    %v387 = vld [vmem:[%s2 + $0xd8] sm:$0xff]
    %v388 = vld [vmem:[%s2 + $0xe0] sm:$0xff]
    %v389 = vld [vmem:[%s2 + $0xe8] sm:$0xff]
    %v390 = vld [vmem:[%s2 + $0xf0] sm:$0xff]
    %v391 = vld [vmem:[%s2 + $0xf8] sm:$0xff]
    %v392 = vld [vmem:[#allocation3] sm:$0xff]
    %v393 = vld [vmem:[#allocation3 + $0x8] sm:$0xff]
    %v394 = vld [vmem:[#allocation3 + $0x10] sm:$0xff]
    %v395 = vld [vmem:[#allocation3 + $0x18] sm:$0xff]
    %v396 = vld [vmem:[#allocation3 + $0x20] sm:$0xff]
    %v397 = vld [vmem:[#allocation3 + $0x28] sm:$0xff]
    %v398 = vld [vmem:[#allocation3 + $0x30] sm:$0xff]
    %v399 = vld [vmem:[#allocation3 + $0x38] sm:$0xff]
    %v400 = vld [vmem:[%s6] sm:$0x1]
    %v402 = vlaneseq
    %v403 = vshrl.u32 %v402, 7
    %v404 = vsub.s32 0, %v403
    %v405 = vrot.slane %v400, %v404
    %vm407 = vcmask 523264
    %v409 = vsel %vm407, %v360, 0
    %v412 = vsel %vm407, %v361, 0
    %v415 = vsel %vm407, %v362, 0
    %v418 = vsel %vm407, %v363, 0
    %v421 = vsel %vm407, %v364, 0
    %v424 = vsel %vm407, %v365, 0
    %v427 = vsel %vm407, %v366, 0
    %v430 = vsel %vm407, %v367, 0
    %v433 = vsel %vm407, %v368, 0
    %v436 = vsel %vm407, %v369, 0
    %v439 = vsel %vm407, %v370, 0
    %v442 = vsel %vm407, %v371, 0
    %v445 = vsel %vm407, %v372, 0
    %v448 = vsel %vm407, %v373, 0
    %v451 = vsel %vm407, %v374, 0
    %v454 = vsel %vm407, %v375, 0
    %v457 = vsel %vm407, %v376, 0
    %v460 = vsel %vm407, %v377, 0
    %v463 = vsel %vm407, %v378, 0
    %v466 = vsel %vm407, %v379, 0
    %v469 = vsel %vm407, %v380, 0
    %v472 = vsel %vm407, %v381, 0
    %v475 = vsel %vm407, %v382, 0
    %v478 = vsel %vm407, %v383, 0
    %v481 = vsel %vm407, %v384, 0
    %v484 = vsel %vm407, %v385, 0
    %v487 = vsel %vm407, %v386, 0
    %v490 = vsel %vm407, %v387, 0
    %v493 = vsel %vm407, %v388, 0
    %v496 = vsel %vm407, %v389, 0
    %v499 = vsel %vm407, %v390, 0
    %v502 = vsel %vm407, %v391, 0
    %504 = vmatprep.subr.mxu0 0.0
    %505 = vmatpush1.msra.mxu0 0.0
    %506 = vmatprep.subr.mxu0 0.0
    %507 = vmatpush1.msra.mxu0 0.0
    %508 = vmatprep.subr.mxu0 0.0
    %509 = vmatpush1.msra.mxu0 0.0
    %510 = vmatprep.subr.mxu0 0.0
    %511 = vmatpush1.msra.mxu0 0.0
    %512 = vmatprep.subr.mxu0 0.0
    %513 = vmatpush1.msra.mxu0 0.0
    %514 = vmatprep.subr.mxu0 0.0
    %515 = vmatpush1.msra.mxu0 0.0
    %516 = vmatprep.subr.mxu0 0.0
    %517 = vmatpush1.msra.mxu0 0.0
    %518 = vmatprep.subr.mxu0 0.0
    %519 = vmatpush1.msra.mxu0 0.0
    %520 = vmatprep.subr.mxu0 0.0
    %521 = vmatpush1.msra.mxu0 %v399
    %522 = vmatprep.subr.mxu0 0.0
    %523 = vmatpush1.msra.mxu0 %v398
    %524 = vmatprep.subr.mxu0 0.0
    %525 = vmatpush1.msra.mxu0 %v397
    %526 = vmatprep.subr.mxu0 0.0
    %527 = vmatpush1.msra.mxu0 %v396
    %528 = vmatprep.subr.mxu0 0.0
    %529 = vmatpush1.msra.mxu0 %v395
    %530 = vmatprep.subr.mxu0 0.0
    %531 = vmatpush1.msra.mxu0 %v394
    %532 = vmatprep.subr.mxu0 0.0
    %533 = vmatpush1.msra.mxu0 %v393
    %534 = vmatprep.subr.mxu0 0.0
    %535 = vmatpush1.msra.mxu0 %v392
    %536 = vmatprep.subr.mxu0 0.0
    %537 = vmatpush2.msra.mxu0 0.0
    %538 = vmatprep.subr.mxu0 0.0
    %539 = vmatpush2.msra.mxu0 0.0
    %540 = vmatprep.subr.mxu0 0.0
    %541 = vmatpush2.msra.mxu0 0.0
    %542 = vmatprep.subr.mxu0 0.0
    %543 = vmatpush2.msra.mxu0 0.0
    %544 = vmatprep.subr.mxu0 0.0
    %545 = vmatpush2.msra.mxu0 0.0
    %546 = vmatprep.subr.mxu0 0.0
    %547 = vmatpush2.msra.mxu0 0.0
    %548 = vmatprep.subr.mxu0 0.0
    %549 = vmatpush2.msra.mxu0 0.0
    %550 = vmatprep.subr.mxu0 0.0
    %551 = vmatpush2.msra.mxu0 0.0
    %552 = vmatprep.subr.mxu0 0.0
    %553 = vmatpush2.msra.mxu0 0.0
    %554 = vmatprep.subr.mxu0 0.0
    %555 = vmatpush2.msra.mxu0 0.0
    %556 = vmatprep.subr.mxu0 0.0
    %557 = vmatpush2.msra.mxu0 0.0
    %558 = vmatprep.subr.mxu0 0.0
    %559 = vmatpush2.msra.mxu0 0.0
    %560 = vmatprep.subr.mxu0 0.0
    %561 = vmatpush2.msra.mxu0 0.0
    %562 = vmatprep.subr.mxu0 0.0
    %563 = vmatpush2.msra.mxu0 0.0
    %564 = vmatprep.subr.mxu0 0.0
    %565 = vmatpush2.msra.mxu0 0.0
    %566 = vmatprep.subr.mxu0 0.0
    %567 = vmatpush2.msra.mxu0 0.0
    %568 = vmatprep.mubr.f32.mxu0 0.0
    %569 = vmatmul.mubr.f32.gmra.mxu0 %v409
    %v570 = vpop.f32.mrf.mxu0
    %v571 = vadd.f32 %v405, %v570
    %v572 = vpop.f32.mrf.mxu0
    %573 = vmatprep.mubr.f32.mxu0 0.0
    %574 = vmatmul.mubr.f32.gmra.mxu0 %v412
    %v575 = vpop.f32.mrf.mxu0
    %v576 = vadd.f32 %v405, %v575
    %v577 = vpop.f32.mrf.mxu0
    %578 = vmatprep.mubr.f32.mxu0 0.0
    %579 = vmatmul.mubr.f32.gmra.mxu0 %v415
    %v580 = vpop.f32.mrf.mxu0
    %v581 = vadd.f32 %v405, %v580
    %v582 = vpop.f32.mrf.mxu0
    %583 = vmatprep.mubr.f32.mxu0 0.0
    %584 = vmatmul.mubr.f32.gmra.mxu0 %v418
    %v585 = vpop.f32.mrf.mxu0
    %v586 = vadd.f32 %v405, %v585
    %v587 = vpop.f32.mrf.mxu0
    %588 = vmatprep.mubr.f32.mxu0 0.0
    %589 = vmatmul.mubr.f32.gmra.mxu0 %v421
    %v590 = vpop.f32.mrf.mxu0
    %v591 = vadd.f32 %v405, %v590
    %v592 = vpop.f32.mrf.mxu0
    %593 = vmatprep.mubr.f32.mxu0 0.0
    %594 = vmatmul.mubr.f32.gmra.mxu0 %v424
    %v595 = vpop.f32.mrf.mxu0
    %v596 = vadd.f32 %v405, %v595
    %v597 = vpop.f32.mrf.mxu0
    %598 = vmatprep.mubr.f32.mxu0 0.0
    %599 = vmatmul.mubr.f32.gmra.mxu0 %v427
    %v600 = vpop.f32.mrf.mxu0
    %v601 = vadd.f32 %v405, %v600
    %v602 = vpop.f32.mrf.mxu0
    %603 = vmatprep.mubr.f32.mxu0 0.0
    %604 = vmatmul.mubr.f32.gmra.mxu0 %v430
    %v605 = vpop.f32.mrf.mxu0
    %v606 = vadd.f32 %v405, %v605
    %v607 = vpop.f32.mrf.mxu0
    %608 = vmatprep.mubr.f32.mxu0 0.0
    %609 = vmatmul.mubr.f32.gmra.mxu0 %v433
    %v610 = vpop.f32.mrf.mxu0
    %v611 = vadd.f32 %v405, %v610
    %v612 = vpop.f32.mrf.mxu0
    %613 = vmatprep.mubr.f32.mxu0 0.0
    %614 = vmatmul.mubr.f32.gmra.mxu0 %v436
    %v615 = vpop.f32.mrf.mxu0
    %v616 = vadd.f32 %v405, %v615
    %v617 = vpop.f32.mrf.mxu0
    %618 = vmatprep.mubr.f32.mxu0 0.0
    %619 = vmatmul.mubr.f32.gmra.mxu0 %v439
    %v620 = vpop.f32.mrf.mxu0
    %v621 = vadd.f32 %v405, %v620
    %v622 = vpop.f32.mrf.mxu0
    %623 = vmatprep.mubr.f32.mxu0 0.0
    %624 = vmatmul.mubr.f32.gmra.mxu0 %v442
    %v625 = vpop.f32.mrf.mxu0
    %v626 = vadd.f32 %v405, %v625
    %v627 = vpop.f32.mrf.mxu0
    %628 = vmatprep.mubr.f32.mxu0 0.0
    %629 = vmatmul.mubr.f32.gmra.mxu0 %v445
    %v630 = vpop.f32.mrf.mxu0
    %v631 = vadd.f32 %v405, %v630
    %v632 = vpop.f32.mrf.mxu0
    %633 = vmatprep.mubr.f32.mxu0 0.0
    %634 = vmatmul.mubr.f32.gmra.mxu0 %v448
    %v635 = vpop.f32.mrf.mxu0
    %v636 = vadd.f32 %v405, %v635
    %v637 = vpop.f32.mrf.mxu0
    %638 = vmatprep.mubr.f32.mxu0 0.0
    %639 = vmatmul.mubr.f32.gmra.mxu0 %v451
    %v640 = vpop.f32.mrf.mxu0
    %v641 = vadd.f32 %v405, %v640
    %v642 = vpop.f32.mrf.mxu0
    %643 = vmatprep.mubr.f32.mxu0 0.0
    %644 = vmatmul.mubr.f32.gmra.mxu0 %v454
    %v645 = vpop.f32.mrf.mxu0
    %v646 = vadd.f32 %v405, %v645
    %v647 = vpop.f32.mrf.mxu0
    %648 = vmatprep.mubr.f32.mxu0 0.0
    %649 = vmatmul.mubr.f32.gmra.mxu0 %v457
    %v650 = vpop.f32.mrf.mxu0
    %v651 = vadd.f32 %v405, %v650
    %v652 = vpop.f32.mrf.mxu0
    %653 = vmatprep.mubr.f32.mxu0 0.0
    %654 = vmatmul.mubr.f32.gmra.mxu0 %v460
    %v655 = vpop.f32.mrf.mxu0
    %v656 = vadd.f32 %v405, %v655
    %v657 = vpop.f32.mrf.mxu0
    %658 = vmatprep.mubr.f32.mxu0 0.0
    %659 = vmatmul.mubr.f32.gmra.mxu0 %v463
    %v660 = vpop.f32.mrf.mxu0
    %v661 = vadd.f32 %v405, %v660
    %v662 = vpop.f32.mrf.mxu0
    %663 = vmatprep.mubr.f32.mxu0 0.0
    %664 = vmatmul.mubr.f32.gmra.mxu0 %v466
    %v665 = vpop.f32.mrf.mxu0
    %v666 = vadd.f32 %v405, %v665
    %v667 = vpop.f32.mrf.mxu0
    %668 = vmatprep.mubr.f32.mxu0 0.0
    %669 = vmatmul.mubr.f32.gmra.mxu0 %v469
    %v670 = vpop.f32.mrf.mxu0
    %v671 = vadd.f32 %v405, %v670
    %v672 = vpop.f32.mrf.mxu0
    %673 = vmatprep.mubr.f32.mxu0 0.0
    %674 = vmatmul.mubr.f32.gmra.mxu0 %v472
    %v675 = vpop.f32.mrf.mxu0
    %v676 = vadd.f32 %v405, %v675
    %v677 = vpop.f32.mrf.mxu0
    %678 = vmatprep.mubr.f32.mxu0 0.0
    %679 = vmatmul.mubr.f32.gmra.mxu0 %v475
    %v680 = vpop.f32.mrf.mxu0
    %v681 = vadd.f32 %v405, %v680
    %v682 = vpop.f32.mrf.mxu0
    %683 = vmatprep.mubr.f32.mxu0 0.0
    %684 = vmatmul.mubr.f32.gmra.mxu0 %v478
    %v685 = vpop.f32.mrf.mxu0
    %v686 = vadd.f32 %v405, %v685
    %v687 = vpop.f32.mrf.mxu0
    %688 = vmatprep.mubr.f32.mxu0 0.0
    %689 = vmatmul.mubr.f32.gmra.mxu0 %v481
    %v690 = vpop.f32.mrf.mxu0
    %v691 = vadd.f32 %v405, %v690
    %v692 = vpop.f32.mrf.mxu0
    %693 = vmatprep.mubr.f32.mxu0 0.0
    %694 = vmatmul.mubr.f32.gmra.mxu0 %v484
    %v695 = vpop.f32.mrf.mxu0
    %v696 = vadd.f32 %v405, %v695
    %v697 = vpop.f32.mrf.mxu0
    %698 = vmatprep.mubr.f32.mxu0 0.0
    %699 = vmatmul.mubr.f32.gmra.mxu0 %v487
    %v700 = vpop.f32.mrf.mxu0
    %v701 = vadd.f32 %v405, %v700
    %v702 = vpop.f32.mrf.mxu0
    %703 = vmatprep.mubr.f32.mxu0 0.0
    %704 = vmatmul.mubr.f32.gmra.mxu0 %v490
    %v705 = vpop.f32.mrf.mxu0
    %v706 = vadd.f32 %v405, %v705
    %v707 = vpop.f32.mrf.mxu0
    %708 = vmatprep.mubr.f32.mxu0 0.0
    %709 = vmatmul.mubr.f32.gmra.mxu0 %v493
    %v710 = vpop.f32.mrf.mxu0
    %v711 = vadd.f32 %v405, %v710
    %v712 = vpop.f32.mrf.mxu0
    %713 = vmatprep.mubr.f32.mxu0 0.0
    %714 = vmatmul.mubr.f32.gmra.mxu0 %v496
    %v715 = vpop.f32.mrf.mxu0
    %v716 = vadd.f32 %v405, %v715
    %v717 = vpop.f32.mrf.mxu0
    %718 = vmatprep.mubr.f32.mxu0 0.0
    %719 = vmatmul.mubr.f32.gmra.mxu0 %v499
    %v720 = vpop.f32.mrf.mxu0
    %v721 = vadd.f32 %v405, %v720
    %v722 = vpop.f32.mrf.mxu0
    %723 = vmatprep.mubr.f32.mxu0 0.0
    %724 = vmatmul.mubr.f32.gmra.mxu0 %v502
    %v725 = vpop.f32.mrf.mxu0
    %v726 = vadd.f32 %v405, %v725
    %v727 = vpop.f32.mrf.mxu0
    %728 = vdwg.mxu0
    %v729 = vtanh.pop %v571
    %v730 = vtanh.pop %v576
    %v731 = vtanh.pop %v581
    %v732 = vtanh.pop %v586
    %v733 = vtanh.pop %v591
    %v734 = vtanh.pop %v596
    %v735 = vtanh.pop %v601
    %v736 = vtanh.pop %v606
    %v737 = vtanh.pop %v611
    %v738 = vtanh.pop %v616
    %v739 = vtanh.pop %v621
    %v740 = vtanh.pop %v626
    %v741 = vtanh.pop %v631
    %v742 = vtanh.pop %v636
    %v743 = vtanh.pop %v641
    %v744 = vtanh.pop %v646
    %v745 = vtanh.pop %v651
    %v746 = vtanh.pop %v656
    %v747 = vtanh.pop %v661
    %v748 = vtanh.pop %v666
    %v749 = vtanh.pop %v671
    %v750 = vtanh.pop %v676
    %v751 = vtanh.pop %v681
    %v752 = vtanh.pop %v686
    %v753 = vtanh.pop %v691
    %v754 = vtanh.pop %v696
    %v755 = vtanh.pop %v701
    %v756 = vtanh.pop %v706
    %v757 = vtanh.pop %v711
    %v758 = vtanh.pop %v716
    %v759 = vtanh.pop %v721
    %v760 = vtanh.pop %v726
    %v761 = vld [vmem:[%s7] sm:$0x1]
    %v763 = vlaneseq
    %v764 = vshrl.u32 %v763, 7
    %v765 = vsub.s32 0, %v764
    %v766 = vrot.slane %v761, %v765
    %v768 = vmul.f32 %v328, %v766
    %v769 = vmul.f32 %v329, %v766
    %v770 = vmul.f32 %v330, %v766
    %v771 = vmul.f32 %v331, %v766
    %v772 = vmul.f32 %v332, %v766
    %v773 = vmul.f32 %v333, %v766
    %v774 = vmul.f32 %v334, %v766
    %v775 = vmul.f32 %v335, %v766
    %v776 = vmul.f32 %v336, %v766
    %v777 = vmul.f32 %v337, %v766
    %v778 = vmul.f32 %v338, %v766
    %v779 = vmul.f32 %v339, %v766
    %v780 = vmul.f32 %v340, %v766
    %v781 = vmul.f32 %v341, %v766
    %v782 = vmul.f32 %v342, %v766
    %v783 = vmul.f32 %v343, %v766
    %v784 = vmul.f32 %v344, %v766
    %v785 = vmul.f32 %v345, %v766
    %v786 = vmul.f32 %v346, %v766
    %v787 = vmul.f32 %v347, %v766
    %v788 = vmul.f32 %v348, %v766
    %v789 = vmul.f32 %v349, %v766
    %v790 = vmul.f32 %v350, %v766
    %v791 = vmul.f32 %v351, %v766
    %v792 = vmul.f32 %v352, %v766
    %v793 = vmul.f32 %v353, %v766
    %v794 = vmul.f32 %v354, %v766
    %v795 = vmul.f32 %v355, %v766
    %v796 = vmul.f32 %v356, %v766
    %v797 = vmul.f32 %v357, %v766
    %v798 = vmul.f32 %v358, %v766
    %v799 = vmul.f32 %v359, %v766
    %800 = vadd.xlane.f32.xlu0 %v768
    %v801 = vpop.xlane.xlu0 %800
    %802 = vadd.xlane.f32.xlu0 %v769
    %v803 = vpop.xlane.xlu0 %802
    %804 = vadd.xlane.f32.xlu0 %v770
    %v805 = vpop.xlane.xlu0 %804
    %806 = vadd.xlane.f32.xlu0 %v771
    %v807 = vpop.xlane.xlu0 %806
    %808 = vadd.xlane.f32.xlu0 %v772
    %v809 = vpop.xlane.xlu0 %808
    %810 = vadd.xlane.f32.xlu0 %v773
    %v811 = vpop.xlane.xlu0 %810
    %812 = vadd.xlane.f32.xlu0 %v774
    %v813 = vpop.xlane.xlu0 %812
    %814 = vadd.xlane.f32.xlu0 %v775
    %v815 = vpop.xlane.xlu0 %814
    %816 = vadd.xlane.f32.xlu0 %v776
    %v817 = vpop.xlane.xlu0 %816
    %818 = vadd.xlane.f32.xlu0 %v777
    %v819 = vpop.xlane.xlu0 %818
    %820 = vadd.xlane.f32.xlu0 %v778
    %v821 = vpop.xlane.xlu0 %820
    %822 = vadd.xlane.f32.xlu0 %v779
    %v823 = vpop.xlane.xlu0 %822
    %824 = vadd.xlane.f32.xlu0 %v780
    %v825 = vpop.xlane.xlu0 %824
    %826 = vadd.xlane.f32.xlu0 %v781
    %v827 = vpop.xlane.xlu0 %826
    %828 = vadd.xlane.f32.xlu0 %v782
    %v829 = vpop.xlane.xlu0 %828
    %830 = vadd.xlane.f32.xlu0 %v783
    %v831 = vpop.xlane.xlu0 %830
    %832 = vadd.xlane.f32.xlu0 %v784
    %v833 = vpop.xlane.xlu0 %832
    %834 = vadd.xlane.f32.xlu0 %v785
    %v835 = vpop.xlane.xlu0 %834
    %836 = vadd.xlane.f32.xlu0 %v786
    %v837 = vpop.xlane.xlu0 %836
    %838 = vadd.xlane.f32.xlu0 %v787
    %v839 = vpop.xlane.xlu0 %838
    %840 = vadd.xlane.f32.xlu0 %v788
    %v841 = vpop.xlane.xlu0 %840
    %842 = vadd.xlane.f32.xlu0 %v789
    %v843 = vpop.xlane.xlu0 %842
    %844 = vadd.xlane.f32.xlu0 %v790
    %v845 = vpop.xlane.xlu0 %844
    %846 = vadd.xlane.f32.xlu0 %v791
    %v847 = vpop.xlane.xlu0 %846
    %848 = vadd.xlane.f32.xlu0 %v792
    %v849 = vpop.xlane.xlu0 %848
    %850 = vadd.xlane.f32.xlu0 %v793
    %v851 = vpop.xlane.xlu0 %850
    %852 = vadd.xlane.f32.xlu0 %v794
    %v853 = vpop.xlane.xlu0 %852
    %854 = vadd.xlane.f32.xlu0 %v795
    %v855 = vpop.xlane.xlu0 %854
    %856 = vadd.xlane.f32.xlu0 %v796
    %v857 = vpop.xlane.xlu0 %856
    %858 = vadd.xlane.f32.xlu0 %v797
    %v859 = vpop.xlane.xlu0 %858
    %860 = vadd.xlane.f32.xlu0 %v798
    %v861 = vpop.xlane.xlu0 %860
    %862 = vadd.xlane.f32.xlu0 %v799
    %v863 = vpop.xlane.xlu0 %862
    %v864 = vld [vmem:[%s8] sm:$0x1]
    %v866 = vlaneseq
    %v867 = vshrl.u32 %v866, 7
    %v868 = vsub.s32 0, %v867
    %v869 = vrot.slane %v864, %v868
    %v871 = vmul.f32 %v729, %v869
    %v872 = vmul.f32 %v730, %v869
    %v873 = vmul.f32 %v731, %v869
    %v874 = vmul.f32 %v732, %v869
    %v875 = vmul.f32 %v733, %v869
    %v876 = vmul.f32 %v734, %v869
    %v877 = vmul.f32 %v735, %v869
    %v878 = vmul.f32 %v736, %v869
    %v879 = vmul.f32 %v737, %v869
    %v880 = vmul.f32 %v738, %v869
    %v881 = vmul.f32 %v739, %v869
    %v882 = vmul.f32 %v740, %v869
    %v883 = vmul.f32 %v741, %v869
    %v884 = vmul.f32 %v742, %v869
    %v885 = vmul.f32 %v743, %v869
    %v886 = vmul.f32 %v744, %v869
    %v887 = vmul.f32 %v745, %v869
    %v888 = vmul.f32 %v746, %v869
    %v889 = vmul.f32 %v747, %v869
    %v890 = vmul.f32 %v748, %v869
    %v891 = vmul.f32 %v749, %v869
    %v892 = vmul.f32 %v750, %v869
    %v893 = vmul.f32 %v751, %v869
    %v894 = vmul.f32 %v752, %v869
    %v895 = vmul.f32 %v753, %v869
    %v896 = vmul.f32 %v754, %v869
    %v897 = vmul.f32 %v755, %v869
    %v898 = vmul.f32 %v756, %v869
    %v899 = vmul.f32 %v757, %v869
    %v900 = vmul.f32 %v758, %v869
    %v901 = vmul.f32 %v759, %v869
    %v902 = vmul.f32 %v760, %v869
    %903 = vadd.xlane.f32.xlu0 %v871
    %v904 = vpop.xlane.xlu0 %903
    %905 = vadd.xlane.f32.xlu0 %v872
    %v906 = vpop.xlane.xlu0 %905
    %907 = vadd.xlane.f32.xlu0 %v873
    %v908 = vpop.xlane.xlu0 %907
    %909 = vadd.xlane.f32.xlu0 %v874
    %v910 = vpop.xlane.xlu0 %909
    %911 = vadd.xlane.f32.xlu0 %v875
    %v912 = vpop.xlane.xlu0 %911
    %913 = vadd.xlane.f32.xlu0 %v876
    %v914 = vpop.xlane.xlu0 %913
    %915 = vadd.xlane.f32.xlu0 %v877
    %v916 = vpop.xlane.xlu0 %915
    %917 = vadd.xlane.f32.xlu0 %v878
    %v918 = vpop.xlane.xlu0 %917
    %919 = vadd.xlane.f32.xlu0 %v879
    %v920 = vpop.xlane.xlu0 %919
    %921 = vadd.xlane.f32.xlu0 %v880
    %v922 = vpop.xlane.xlu0 %921
    %923 = vadd.xlane.f32.xlu0 %v881
    %v924 = vpop.xlane.xlu0 %923
    %925 = vadd.xlane.f32.xlu0 %v882
    %v926 = vpop.xlane.xlu0 %925
    %927 = vadd.xlane.f32.xlu0 %v883
    %v928 = vpop.xlane.xlu0 %927
    %929 = vadd.xlane.f32.xlu0 %v884
    %v930 = vpop.xlane.xlu0 %929
    %931 = vadd.xlane.f32.xlu0 %v885
    %v932 = vpop.xlane.xlu0 %931
    %933 = vadd.xlane.f32.xlu0 %v886
    %v934 = vpop.xlane.xlu0 %933
    %935 = vadd.xlane.f32.xlu0 %v887
    %v936 = vpop.xlane.xlu0 %935
    %937 = vadd.xlane.f32.xlu0 %v888
    %v938 = vpop.xlane.xlu0 %937
    %939 = vadd.xlane.f32.xlu0 %v889
    %v940 = vpop.xlane.xlu0 %939
    %941 = vadd.xlane.f32.xlu0 %v890
    %v942 = vpop.xlane.xlu0 %941
    %943 = vadd.xlane.f32.xlu0 %v891
    %v944 = vpop.xlane.xlu0 %943
    %945 = vadd.xlane.f32.xlu0 %v892
    %v946 = vpop.xlane.xlu0 %945
    %947 = vadd.xlane.f32.xlu0 %v893
    %v948 = vpop.xlane.xlu0 %947
    %949 = vadd.xlane.f32.xlu0 %v894
    %v950 = vpop.xlane.xlu0 %949
    %951 = vadd.xlane.f32.xlu0 %v895
    %v952 = vpop.xlane.xlu0 %951
    %953 = vadd.xlane.f32.xlu0 %v896
    %v954 = vpop.xlane.xlu0 %953
    %955 = vadd.xlane.f32.xlu0 %v897
    %v956 = vpop.xlane.xlu0 %955
    %957 = vadd.xlane.f32.xlu0 %v898
    %v958 = vpop.xlane.xlu0 %957
    %959 = vadd.xlane.f32.xlu0 %v899
    %v960 = vpop.xlane.xlu0 %959
    %961 = vadd.xlane.f32.xlu0 %v900
    %v962 = vpop.xlane.xlu0 %961
    %963 = vadd.xlane.f32.xlu0 %v901
    %v964 = vpop.xlane.xlu0 %963
    %965 = vadd.xlane.f32.xlu0 %v902
    %v966 = vpop.xlane.xlu0 %965
    %v967 = vadd.f32 %v801, %v904
    %v968 = vadd.f32 %v803, %v906
    %v969 = vadd.f32 %v805, %v908
    %v970 = vadd.f32 %v807, %v910
    %v971 = vadd.f32 %v809, %v912
    %v972 = vadd.f32 %v811, %v914
    %v973 = vadd.f32 %v813, %v916
    %v974 = vadd.f32 %v815, %v918
    %v975 = vadd.f32 %v817, %v920
    %v976 = vadd.f32 %v819, %v922
    %v977 = vadd.f32 %v821, %v924
    %v978 = vadd.f32 %v823, %v926
    %v979 = vadd.f32 %v825, %v928
    %v980 = vadd.f32 %v827, %v930
    %v981 = vadd.f32 %v829, %v932
    %v982 = vadd.f32 %v831, %v934
    %v983 = vadd.f32 %v833, %v936
    %v984 = vadd.f32 %v835, %v938
    %v985 = vadd.f32 %v837, %v940
    %v986 = vadd.f32 %v839, %v942
    %v987 = vadd.f32 %v841, %v944
    %v988 = vadd.f32 %v843, %v946
    %v989 = vadd.f32 %v845, %v948
    %v990 = vadd.f32 %v847, %v950
    %v991 = vadd.f32 %v849, %v952
    %v992 = vadd.f32 %v851, %v954
    %v993 = vadd.f32 %v853, %v956
    %v994 = vadd.f32 %v855, %v958
    %v995 = vadd.f32 %v857, %v960
    %v996 = vadd.f32 %v859, %v962
    %v997 = vadd.f32 %v861, %v964
    %v998 = vadd.f32 %v863, %v966
    %s999 = sld [smem:[#allocation2]]
    %v1000 = vstv %s999
    %v1001 = vadd.f32 %v967, %v1000
    %v1002 = vadd.f32 %v968, %v1000
    %v1003 = vadd.f32 %v969, %v1000
    %v1004 = vadd.f32 %v970, %v1000
    %v1005 = vadd.f32 %v971, %v1000
    %v1006 = vadd.f32 %v972, %v1000
    %v1007 = vadd.f32 %v973, %v1000
    %v1008 = vadd.f32 %v974, %v1000
    %v1009 = vadd.f32 %v975, %v1000
    %v1010 = vadd.f32 %v976, %v1000
    %v1011 = vadd.f32 %v977, %v1000
    %v1012 = vadd.f32 %v978, %v1000
    %v1013 = vadd.f32 %v979, %v1000
    %v1014 = vadd.f32 %v980, %v1000
    %v1015 = vadd.f32 %v981, %v1000
    %v1016 = vadd.f32 %v982, %v1000
    %v1017 = vadd.f32 %v983, %v1000
    %v1018 = vadd.f32 %v984, %v1000
    %v1019 = vadd.f32 %v985, %v1000
    %v1020 = vadd.f32 %v986, %v1000
    %v1021 = vadd.f32 %v987, %v1000
    %v1022 = vadd.f32 %v988, %v1000
    %v1023 = vadd.f32 %v989, %v1000
    %v1024 = vadd.f32 %v990, %v1000
    %v1025 = vadd.f32 %v991, %v1000
    %v1026 = vadd.f32 %v992, %v1000
    %v1027 = vadd.f32 %v993, %v1000
    %v1028 = vadd.f32 %v994, %v1000
    %v1029 = vadd.f32 %v995, %v1000
    %v1030 = vadd.f32 %v996, %v1000
    %v1031 = vadd.f32 %v997, %v1000
    %v1032 = vadd.f32 %v998, %v1000
    %v1033 = vmul.f32 %v1001, 1.442695
    %v1034 = vpow.pop %v1033
    %v1035 = vmul.f32 %v1002, 1.442695
    %v1036 = vpow.pop %v1035
    %v1037 = vmul.f32 %v1003, 1.442695
    %v1038 = vpow.pop %v1037
    %v1039 = vmul.f32 %v1004, 1.442695
    %v1040 = vpow.pop %v1039
    %v1041 = vmul.f32 %v1005, 1.442695
    %v1042 = vpow.pop %v1041
    %v1043 = vmul.f32 %v1006, 1.442695
    %v1044 = vpow.pop %v1043
    %v1045 = vmul.f32 %v1007, 1.442695
    %v1046 = vpow.pop %v1045
    %v1047 = vmul.f32 %v1008, 1.442695
    %v1048 = vpow.pop %v1047
    %v1049 = vmul.f32 %v1009, 1.442695
    %v1050 = vpow.pop %v1049
    %v1051 = vmul.f32 %v1010, 1.442695
    %v1052 = vpow.pop %v1051
    %v1053 = vmul.f32 %v1011, 1.442695
    %v1054 = vpow.pop %v1053
    %v1055 = vmul.f32 %v1012, 1.442695
    %v1056 = vpow.pop %v1055
    %v1057 = vmul.f32 %v1013, 1.442695
    %v1058 = vpow.pop %v1057
    %v1059 = vmul.f32 %v1014, 1.442695
    %v1060 = vpow.pop %v1059
    %v1061 = vmul.f32 %v1015, 1.442695
    %v1062 = vpow.pop %v1061
    %v1063 = vmul.f32 %v1016, 1.442695
    %v1064 = vpow.pop %v1063
    %v1065 = vmul.f32 %v1017, 1.442695
    %v1066 = vpow.pop %v1065
    %v1067 = vmul.f32 %v1018, 1.442695
    %v1068 = vpow.pop %v1067
    %v1069 = vmul.f32 %v1019, 1.442695
    %v1070 = vpow.pop %v1069
    %v1071 = vmul.f32 %v1020, 1.442695
    %v1072 = vpow.pop %v1071
    %v1073 = vmul.f32 %v1021, 1.442695
    %v1074 = vpow.pop %v1073
    %v1075 = vmul.f32 %v1022, 1.442695
    %v1076 = vpow.pop %v1075
    %v1077 = vmul.f32 %v1023, 1.442695
    %v1078 = vpow.pop %v1077
    %v1079 = vmul.f32 %v1024, 1.442695
    %v1080 = vpow.pop %v1079
    %v1081 = vmul.f32 %v1025, 1.442695
    %v1082 = vpow.pop %v1081
    %v1083 = vmul.f32 %v1026, 1.442695
    %v1084 = vpow.pop %v1083
    %v1085 = vmul.f32 %v1027, 1.442695
    %v1086 = vpow.pop %v1085
    %v1087 = vmul.f32 %v1028, 1.442695
    %v1088 = vpow.pop %v1087
    %v1089 = vmul.f32 %v1029, 1.442695
    %v1090 = vpow.pop %v1089
    %v1091 = vmul.f32 %v1030, 1.442695
    %v1092 = vpow.pop %v1091
    %v1093 = vmul.f32 %v1031, 1.442695
    %v1094 = vpow.pop %v1093
    %v1095 = vmul.f32 %v1032, 1.442695
    %v1096 = vpow.pop %v1095
    %v1097 = vadd.f32 %v1034, 1.0
    %v1098 = vadd.f32 %v1036, 1.0
    %v1099 = vadd.f32 %v1038, 1.0
    %v1100 = vadd.f32 %v1040, 1.0
    %v1101 = vadd.f32 %v1042, 1.0
    %v1102 = vadd.f32 %v1044, 1.0
    %v1103 = vadd.f32 %v1046, 1.0
    %v1104 = vadd.f32 %v1048, 1.0
    %v1105 = vadd.f32 %v1050, 1.0
    %v1106 = vadd.f32 %v1052, 1.0
    %v1107 = vadd.f32 %v1054, 1.0
    %v1108 = vadd.f32 %v1056, 1.0
    %v1109 = vadd.f32 %v1058, 1.0
    %v1110 = vadd.f32 %v1060, 1.0
    %v1111 = vadd.f32 %v1062, 1.0
    %v1112 = vadd.f32 %v1064, 1.0
    %v1113 = vadd.f32 %v1066, 1.0
    %v1114 = vadd.f32 %v1068, 1.0
    %v1115 = vadd.f32 %v1070, 1.0
    %v1116 = vadd.f32 %v1072, 1.0
    %v1117 = vadd.f32 %v1074, 1.0
    %v1118 = vadd.f32 %v1076, 1.0
    %v1119 = vadd.f32 %v1078, 1.0
    %v1120 = vadd.f32 %v1080, 1.0
    %v1121 = vadd.f32 %v1082, 1.0
    %v1122 = vadd.f32 %v1084, 1.0
    %v1123 = vadd.f32 %v1086, 1.0
    %v1124 = vadd.f32 %v1088, 1.0
    %v1125 = vadd.f32 %v1090, 1.0
    %v1126 = vadd.f32 %v1092, 1.0
    %v1127 = vadd.f32 %v1094, 1.0
    %v1128 = vadd.f32 %v1096, 1.0
    %v1129 = vrcp.pop %v1097
    %v1130 = vmul.f32 1.0, %v1129
    %v1131 = vrcp.pop %v1098
    %v1132 = vmul.f32 1.0, %v1131
    %v1133 = vrcp.pop %v1099
    %v1134 = vmul.f32 1.0, %v1133
    %v1135 = vrcp.pop %v1100
    %v1136 = vmul.f32 1.0, %v1135
    %v1137 = vrcp.pop %v1101
    %v1138 = vmul.f32 1.0, %v1137
    %v1139 = vrcp.pop %v1102
    %v1140 = vmul.f32 1.0, %v1139
    %v1141 = vrcp.pop %v1103
    %v1142 = vmul.f32 1.0, %v1141
    %v1143 = vrcp.pop %v1104
    %v1144 = vmul.f32 1.0, %v1143
    %v1145 = vrcp.pop %v1105
    %v1146 = vmul.f32 1.0, %v1145
    %v1147 = vrcp.pop %v1106
    %v1148 = vmul.f32 1.0, %v1147
    %v1149 = vrcp.pop %v1107
    %v1150 = vmul.f32 1.0, %v1149
    %v1151 = vrcp.pop %v1108
    %v1152 = vmul.f32 1.0, %v1151
    %v1153 = vrcp.pop %v1109
    %v1154 = vmul.f32 1.0, %v1153
    %v1155 = vrcp.pop %v1110
    %v1156 = vmul.f32 1.0, %v1155
    %v1157 = vrcp.pop %v1111
    %v1158 = vmul.f32 1.0, %v1157
    %v1159 = vrcp.pop %v1112
    %v1160 = vmul.f32 1.0, %v1159
    %v1161 = vrcp.pop %v1113
    %v1162 = vmul.f32 1.0, %v1161
    %v1163 = vrcp.pop %v1114
    %v1164 = vmul.f32 1.0, %v1163
    %v1165 = vrcp.pop %v1115
    %v1166 = vmul.f32 1.0, %v1165
    %v1167 = vrcp.pop %v1116
    %v1168 = vmul.f32 1.0, %v1167
    %v1169 = vrcp.pop %v1117
    %v1170 = vmul.f32 1.0, %v1169
    %v1171 = vrcp.pop %v1118
    %v1172 = vmul.f32 1.0, %v1171
    %v1173 = vrcp.pop %v1119
    %v1174 = vmul.f32 1.0, %v1173
    %v1175 = vrcp.pop %v1120
    %v1176 = vmul.f32 1.0, %v1175
    %v1177 = vrcp.pop %v1121
    %v1178 = vmul.f32 1.0, %v1177
    %v1179 = vrcp.pop %v1122
    %v1180 = vmul.f32 1.0, %v1179
    %v1181 = vrcp.pop %v1123
    %v1182 = vmul.f32 1.0, %v1181
    %v1183 = vrcp.pop %v1124
    %v1184 = vmul.f32 1.0, %v1183
    %v1185 = vrcp.pop %v1125
    %v1186 = vmul.f32 1.0, %v1185
    %v1187 = vrcp.pop %v1126
    %v1188 = vmul.f32 1.0, %v1187
    %v1189 = vrcp.pop %v1127
    %v1190 = vmul.f32 1.0, %v1189
    %v1191 = vrcp.pop %v1128
    %v1192 = vmul.f32 1.0, %v1191
    %v1193 = vsub.f32 1.0, %v1130
    %v1194 = vsub.f32 1.0, %v1132
    %v1195 = vsub.f32 1.0, %v1134
    %v1196 = vsub.f32 1.0, %v1136
    %v1197 = vsub.f32 1.0, %v1138
    %v1198 = vsub.f32 1.0, %v1140
    %v1199 = vsub.f32 1.0, %v1142
    %v1200 = vsub.f32 1.0, %v1144
    %v1201 = vsub.f32 1.0, %v1146
    %v1202 = vsub.f32 1.0, %v1148
    %v1203 = vsub.f32 1.0, %v1150
    %v1204 = vsub.f32 1.0, %v1152
    %v1205 = vsub.f32 1.0, %v1154
    %v1206 = vsub.f32 1.0, %v1156
    %v1207 = vsub.f32 1.0, %v1158
    %v1208 = vsub.f32 1.0, %v1160
    %v1209 = vsub.f32 1.0, %v1162
    %v1210 = vsub.f32 1.0, %v1164
    %v1211 = vsub.f32 1.0, %v1166
    %v1212 = vsub.f32 1.0, %v1168
    %v1213 = vsub.f32 1.0, %v1170
    %v1214 = vsub.f32 1.0, %v1172
    %v1215 = vsub.f32 1.0, %v1174
    %v1216 = vsub.f32 1.0, %v1176
    %v1217 = vsub.f32 1.0, %v1178
    %v1218 = vsub.f32 1.0, %v1180
    %v1219 = vsub.f32 1.0, %v1182
    %v1220 = vsub.f32 1.0, %v1184
    %v1221 = vsub.f32 1.0, %v1186
    %v1222 = vsub.f32 1.0, %v1188
    %v1223 = vsub.f32 1.0, %v1190
    %v1224 = vsub.f32 1.0, %v1192
    %v1225 = vmul.f32 %v1130, %v328
    %v1226 = vmul.f32 %v1132, %v329
    %v1227 = vmul.f32 %v1134, %v330
    %v1228 = vmul.f32 %v1136, %v331
    %v1229 = vmul.f32 %v1138, %v332
    %v1230 = vmul.f32 %v1140, %v333
    %v1231 = vmul.f32 %v1142, %v334
    %v1232 = vmul.f32 %v1144, %v335
    %v1233 = vmul.f32 %v1146, %v336
    %v1234 = vmul.f32 %v1148, %v337
    %v1235 = vmul.f32 %v1150, %v338
    %v1236 = vmul.f32 %v1152, %v339
    %v1237 = vmul.f32 %v1154, %v340
    %v1238 = vmul.f32 %v1156, %v341
    %v1239 = vmul.f32 %v1158, %v342
    %v1240 = vmul.f32 %v1160, %v343
    %v1241 = vmul.f32 %v1162, %v344
    %v1242 = vmul.f32 %v1164, %v345
    %v1243 = vmul.f32 %v1166, %v346
    %v1244 = vmul.f32 %v1168, %v347
    %v1245 = vmul.f32 %v1170, %v348
    %v1246 = vmul.f32 %v1172, %v349
    %v1247 = vmul.f32 %v1174, %v350
    %v1248 = vmul.f32 %v1176, %v351
    %v1249 = vmul.f32 %v1178, %v352
    %v1250 = vmul.f32 %v1180, %v353
    %v1251 = vmul.f32 %v1182, %v354
    %v1252 = vmul.f32 %v1184, %v355
    %v1253 = vmul.f32 %v1186, %v356
    %v1254 = vmul.f32 %v1188, %v357
    %v1255 = vmul.f32 %v1190, %v358
    %v1256 = vmul.f32 %v1192, %v359
    %v1257 = vmul.f32 %v1193, %v729
    %v1258 = vmul.f32 %v1194, %v730
    %v1259 = vmul.f32 %v1195, %v731
    %v1260 = vmul.f32 %v1196, %v732
    %v1261 = vmul.f32 %v1197, %v733
    %v1262 = vmul.f32 %v1198, %v734
    %v1263 = vmul.f32 %v1199, %v735
    %v1264 = vmul.f32 %v1200, %v736
    %v1265 = vmul.f32 %v1201, %v737
    %v1266 = vmul.f32 %v1202, %v738
    %v1267 = vmul.f32 %v1203, %v739
    %v1268 = vmul.f32 %v1204, %v740
    %v1269 = vmul.f32 %v1205, %v741
    %v1270 = vmul.f32 %v1206, %v742
    %v1271 = vmul.f32 %v1207, %v743
    %v1272 = vmul.f32 %v1208, %v744
    %v1273 = vmul.f32 %v1209, %v745
    %v1274 = vmul.f32 %v1210, %v746
    %v1275 = vmul.f32 %v1211, %v747
    %v1276 = vmul.f32 %v1212, %v748
    %v1277 = vmul.f32 %v1213, %v749
    %v1278 = vmul.f32 %v1214, %v750
    %v1279 = vmul.f32 %v1215, %v751
    %v1280 = vmul.f32 %v1216, %v752
    %v1281 = vmul.f32 %v1217, %v753
    %v1282 = vmul.f32 %v1218, %v754
    %v1283 = vmul.f32 %v1219, %v755
    %v1284 = vmul.f32 %v1220, %v756
    %v1285 = vmul.f32 %v1221, %v757
    %v1286 = vmul.f32 %v1222, %v758
    %v1287 = vmul.f32 %v1223, %v759
    %v1288 = vmul.f32 %v1224, %v760
    %v1289 = vadd.f32 %v1225, %v1257
    %v1290 = vadd.f32 %v1226, %v1258
    %v1291 = vadd.f32 %v1227, %v1259
    %v1292 = vadd.f32 %v1228, %v1260
    %v1293 = vadd.f32 %v1229, %v1261
    %v1294 = vadd.f32 %v1230, %v1262
    %v1295 = vadd.f32 %v1231, %v1263
    %v1296 = vadd.f32 %v1232, %v1264
    %v1297 = vadd.f32 %v1233, %v1265
    %v1298 = vadd.f32 %v1234, %v1266
    %v1299 = vadd.f32 %v1235, %v1267
    %v1300 = vadd.f32 %v1236, %v1268
    %v1301 = vadd.f32 %v1237, %v1269
    %v1302 = vadd.f32 %v1238, %v1270
    %v1303 = vadd.f32 %v1239, %v1271
    %v1304 = vadd.f32 %v1240, %v1272
    %v1305 = vadd.f32 %v1241, %v1273
    %v1306 = vadd.f32 %v1242, %v1274
    %v1307 = vadd.f32 %v1243, %v1275
    %v1308 = vadd.f32 %v1244, %v1276
    %v1309 = vadd.f32 %v1245, %v1277
    %v1310 = vadd.f32 %v1246, %v1278
    %v1311 = vadd.f32 %v1247, %v1279
    %v1312 = vadd.f32 %v1248, %v1280
    %v1313 = vadd.f32 %v1249, %v1281
    %v1314 = vadd.f32 %v1250, %v1282
    %v1315 = vadd.f32 %v1251, %v1283
    %v1316 = vadd.f32 %v1252, %v1284
    %v1317 = vadd.f32 %v1253, %v1285
    %v1318 = vadd.f32 %v1254, %v1286
    %v1319 = vadd.f32 %v1255, %v1287
    %v1320 = vadd.f32 %v1256, %v1288
    %1321 = vst [vmem:[#allocation6] sm:$0xff] %v1289
    %1322 = vst [vmem:[#allocation6 + $0x8] sm:$0xff] %v1290
    %1323 = vst [vmem:[#allocation6 + $0x10] sm:$0xff] %v1291
    %1324 = vst [vmem:[#allocation6 + $0x18] sm:$0xff] %v1292
    %1325 = vst [vmem:[#allocation6 + $0x20] sm:$0xff] %v1293
    %1326 = vst [vmem:[#allocation6 + $0x28] sm:$0xff] %v1294
    %1327 = vst [vmem:[#allocation6 + $0x30] sm:$0xff] %v1295
    %1328 = vst [vmem:[#allocation6 + $0x38] sm:$0xff] %v1296
    %1329 = vst [vmem:[#allocation6 + $0x40] sm:$0xff] %v1297
    %1330 = vst [vmem:[#allocation6 + $0x48] sm:$0xff] %v1298
    %1331 = vst [vmem:[#allocation6 + $0x50] sm:$0xff] %v1299
    %1332 = vst [vmem:[#allocation6 + $0x58] sm:$0xff] %v1300
    %1333 = vst [vmem:[#allocation6 + $0x60] sm:$0xff] %v1301
    %1334 = vst [vmem:[#allocation6 + $0x68] sm:$0xff] %v1302
    %1335 = vst [vmem:[#allocation6 + $0x70] sm:$0xff] %v1303
    %1336 = vst [vmem:[#allocation6 + $0x78] sm:$0xff] %v1304
    %1337 = vst [vmem:[#allocation6 + $0x80] sm:$0xff] %v1305
    %1338 = vst [vmem:[#allocation6 + $0x88] sm:$0xff] %v1306
    %1339 = vst [vmem:[#allocation6 + $0x90] sm:$0xff] %v1307
    %1340 = vst [vmem:[#allocation6 + $0x98] sm:$0xff] %v1308
    %1341 = vst [vmem:[#allocation6 + $0xa0] sm:$0xff] %v1309
    %1342 = vst [vmem:[#allocation6 + $0xa8] sm:$0xff] %v1310
    %1343 = vst [vmem:[#allocation6 + $0xb0] sm:$0xff] %v1311
    %1344 = vst [vmem:[#allocation6 + $0xb8] sm:$0xff] %v1312
    %1345 = vst [vmem:[#allocation6 + $0xc0] sm:$0xff] %v1313
    %1346 = vst [vmem:[#allocation6 + $0xc8] sm:$0xff] %v1314
    %1347 = vst [vmem:[#allocation6 + $0xd0] sm:$0xff] %v1315
    %1348 = vst [vmem:[#allocation6 + $0xd8] sm:$0xff] %v1316
    %1349 = vst [vmem:[#allocation6 + $0xe0] sm:$0xff] %v1317
    %1350 = vst [vmem:[#allocation6 + $0xe8] sm:$0xff] %v1318
    %1351 = vst [vmem:[#allocation6 + $0xf0] sm:$0xff] %v1319
    %1352 = vst [vmem:[#allocation6 + $0xf8] sm:$0xff] %v1320
    // Predicated region
    $region42: #{tpu_custom_call.1} parent=1 // pred_check
      _
    $region43: #{tpu_custom_call.1} parent=1 // pred_check_branch
      %1354 = sbr.rel (0) target = $region45
    $region44: #{tpu_custom_call.1} parent=1 // pred_region
      %s1356 = ssub.s32 4096, 4096
      %1357 = vsyncadd [#allocation5], %s1356
      %s1358 = sshll.u32 [#allocation6], 4
      %s1359 = int_to_ptr.vmem [resolvable:$true] %s1358
      %1364 = dma.vmem_to_hbm [thread:$0]  %s1359, 4096, %s9, [#allocation5], 128, 128, 8
    $region45: #{tpu_custom_call.1} parent=1 // pred_fallthru
      _
    // Predicated region
    $region46: #{tpu_custom_call.1} parent=1 // pred_check
      _
    $region47: #{tpu_custom_call.1} parent=1 // pred_check_branch
      %1366 = sbr.rel (0) target = $region49
    $region48: #{tpu_custom_call.1} parent=1 // pred_region
      %1367 = dma.done [#allocation5], 4096
    $region49: #{tpu_custom_call.1} parent=1 // pred_fallthru
      _
    %1368 = vsyncpa [#allocation4], 1
    %1369 = vsyncpa [#allocation5], 1

</llo_original>
